<compile_context>
chip_gen: v7x
topology: tpu7x:2x2x1
jax: 0.10.0
libtpu: 0.0.40
codegen_flags: <defaults>
</compile_context>

<pallas_src>
import jax
import jax.numpy as jnp
from jax.experimental import pallas as pl
from jax.experimental.pallas import tpu as pltpu


def _mc_pool_kernel(x_ref, u_ref, o_ref):
    """x_ref: (K, TN) window weights; u_ref: (1, TN) uniforms in [0,1);
    o_ref: (1, TN) sampled index within the window, as float32."""
    K = x_ref.shape[0]
    x = x_ref[...].astype(jnp.float32)             # (K, TN) upcast in VMEM
    total = jnp.sum(x, axis=0, keepdims=True)      # (1, TN)
    thresh = u_ref[...] * total                    # scaled threshold in [0, total)

    # Inverse-CDF sampling: index = #{k : cumsum_k <= thresh}.  K is tiny
    # (pool_h*pool_w), so keep this as an unrolled VPU add/compare chain.
    cum = jnp.zeros_like(total)
    count = jnp.zeros_like(total)
    for k in range(K):
        cum = cum + x[k:k + 1, :]
        count = count + (cum <= thresh).astype(jnp.float32)
    # All-zero windows clamp to K-1 (torch.multinomial would raise instead).
    o_ref[...] = jnp.minimum(count, float(K - 1))


def monte_carlo_pooling(x, pool_size=(2, 2), seed=0, tile_n=4096):
    """x: (B, C, H, W) float array.  Returns (B, C, H//ph, W//pw) float32 of
    per-window sampled indices (same semantics as the PyTorch module)."""
    B, C, H, W = x.shape
    ph, pw = pool_size
    Hp, Wp = H // ph, W // pw
    K = ph * pw

    # Repack pooling windows into a (K, N) slab in ONE shot with the big N
    # axis last/contiguous; keep the native dtype (no wrapper f32 cast).
    xb = x[:, :, :Hp * ph, :Wp * pw]
    blocks = (xb.reshape(B, C, Hp, ph, Wp, pw)
                .transpose(3, 5, 0, 1, 2, 4)
                .reshape(K, -1))                      # (K, N)
    N = blocks.shape[1]

    # Effective lane tile: multiple of 128, capped at tile_n, no bigger than
    # needed for small inputs.
    n128 = ((N + 127) // 128) * 128
    tn = min(tile_n, n128)
    n_pad = ((N + tn - 1) // tn) * tn
    if n_pad != N:
        # benign positive weights in the padded lanes; results are discarded
        blocks = jnp.pad(blocks, ((0, 0), (0, n_pad - N)), constant_values=1.0)

    # Uniform samples, one per output element, generated outside the kernel
    # (portable across TPU hardware and interpret mode; only 1/K of the
    # input HBM traffic).
    u = jax.random.uniform(jax.random.PRNGKey(seed), (1, n_pad),
                           dtype=jnp.float32)

    out = pl.pallas_call(
        _mc_pool_kernel,
        out_shape=jax.ShapeDtypeStruct((1, n_pad), jnp.float32),
        grid=(n_pad // tn,),
        in_specs=[pl.BlockSpec((K, tn), lambda i: (0, i)),
                  pl.BlockSpec((1, tn), lambda i: (0, i))],
        out_specs=pl.BlockSpec((1, tn), lambda i: (0, i)),
        compiler_params=pltpu.CompilerParams(
            dimension_semantics=("parallel",)),
    )(blocks, u)

    return out[0, :N].reshape(B, C, Hp, Wp)


if __name__ == "__main__":
    key = jax.random.PRNGKey(0)
    # small NCHW input, analogous to torch.rand(B, C, H, W)
    x = jax.random.uniform(key, (2, 4, 16, 16), dtype=jnp.float32)

    pooled = monte_carlo_pooling(x, pool_size=(2, 2), seed=0)
    pooled = jax.block_until_ready(pooled)

    assert pooled.shape == (2, 4, 8, 8)
    assert pooled.dtype == jnp.float32
    # sampled indices must be integral and lie in [0, pool_h*pool_w - 1]
    assert bool(jnp.all(pooled >= 0.0)) and bool(jnp.all(pooled <= 3.0))
    assert bool(jnp.all(pooled == jnp.round(pooled)))
    print("KERNEL_OK")
</pallas_src>

<mosaic_0001>
module attributes {stable_mosaic.version = 11 : i64} {
  func.func @_mc_pool_kernel(%arg0: i32, %arg1: memref<4x512xf32, #tpu.memory_space<vmem>>, %arg2: memref<1x512xf32, #tpu.memory_space<vmem>>, %arg3: memref<1x512xf32, #tpu.memory_space<vmem>>) attributes {dimension_semantics = [#tpu.dimension_semantics<parallel>], iteration_bounds = array<i64: 1>, scalar_prefetch = 0 : i64, scratch_operands = 0 : i64, tpu.core_type = #tpu.core_type<tc>, window_params = [{transform_indices = @transform_0, window_bounds = array<i64: 4, 512>}, {transform_indices = @transform_1, window_bounds = array<i64: 1, 512>}, {transform_indices = @transform_2, window_bounds = array<i64: 1, 512>}]} {
    %c0 = arith.constant 0 : index
    %c0_0 = arith.constant 0 : index
    %0 = vector.load %arg1[%c0, %c0_0] : memref<4x512xf32, #tpu.memory_space<vmem>>, vector<4x512xf32>
    %cst = arith.constant dense<0.000000e+00> : vector<512xf32>
    %1 = vector.multi_reduction <add>, %0, %cst [0] : vector<4x512xf32> to vector<512xf32>
    %2 = vector.shape_cast %1 : vector<512xf32> to vector<1x512xf32>
    %c0_1 = arith.constant 0 : index
    %c0_2 = arith.constant 0 : index
    %3 = vector.load %arg2[%c0_1, %c0_2] : memref<1x512xf32, #tpu.memory_space<vmem>>, vector<1x512xf32>
    %4 = arith.mulf %3, %2 : vector<1x512xf32>
    %cst_3 = arith.constant 0.000000e+00 : f32
    %5 = vector.broadcast %cst_3 : f32 to vector<1x512xf32>
    %cst_4 = arith.constant 0.000000e+00 : f32
    %6 = vector.broadcast %cst_4 : f32 to vector<1x512xf32>
    %7 = vector.extract_strided_slice %0 {offsets = [0, 0], sizes = [1, 512], strides = [1, 1]} : vector<4x512xf32> to vector<1x512xf32>
    %8 = arith.addf %5, %7 : vector<1x512xf32>
    %9 = arith.cmpf ole, %8, %4 : vector<1x512xf32>
    %10 = arith.extui %9 : vector<1x512xi1> to vector<1x512xi32>
    %11 = arith.sitofp %10 : vector<1x512xi32> to vector<1x512xf32>
    %12 = arith.addf %6, %11 : vector<1x512xf32>
    %13 = vector.extract_strided_slice %0 {offsets = [1, 0], sizes = [1, 512], strides = [1, 1]} : vector<4x512xf32> to vector<1x512xf32>
    %14 = arith.addf %8, %13 : vector<1x512xf32>
    %15 = arith.cmpf ole, %14, %4 : vector<1x512xf32>
    %16 = arith.extui %15 : vector<1x512xi1> to vector<1x512xi32>
    %17 = arith.sitofp %16 : vector<1x512xi32> to vector<1x512xf32>
    %18 = arith.addf %12, %17 : vector<1x512xf32>
    %19 = vector.extract_strided_slice %0 {offsets = [2, 0], sizes = [1, 512], strides = [1, 1]} : vector<4x512xf32> to vector<1x512xf32>
    %20 = arith.addf %14, %19 : vector<1x512xf32>
    %21 = arith.cmpf ole, %20, %4 : vector<1x512xf32>
    %22 = arith.extui %21 : vector<1x512xi1> to vector<1x512xi32>
    %23 = arith.sitofp %22 : vector<1x512xi32> to vector<1x512xf32>
    %24 = arith.addf %18, %23 : vector<1x512xf32>
    %25 = vector.extract_strided_slice %0 {offsets = [3, 0], sizes = [1, 512], strides = [1, 1]} : vector<4x512xf32> to vector<1x512xf32>
    %26 = arith.addf %20, %25 : vector<1x512xf32>
    %27 = arith.cmpf ole, %26, %4 : vector<1x512xf32>
    %28 = arith.extui %27 : vector<1x512xi1> to vector<1x512xi32>
    %29 = arith.sitofp %28 : vector<1x512xi32> to vector<1x512xf32>
    %30 = arith.addf %24, %29 : vector<1x512xf32>
    %cst_5 = arith.constant 3.000000e+00 : f32
    %31 = vector.broadcast %cst_5 : f32 to vector<1x512xf32>
    %32 = arith.minimumf %30, %31 : vector<1x512xf32>
    %c0_6 = arith.constant 0 : index
    %c0_7 = arith.constant 0 : index
    %33 = vector.load %arg3[%c0_6, %c0_7] : memref<1x512xf32, #tpu.memory_space<vmem>>, vector<1x512xf32>
    tpu.vector_store %arg3[%c0_6, %c0_7], %32 {strides = array<i32>} : memref<1x512xf32, #tpu.memory_space<vmem>>, vector<1x512xf32>,
    return
  }
  func.func @transform_0(%arg0: i32) -> (i32, i32) {
    %c0_i32 = arith.constant 0 : i32
    %c0_i32_0 = arith.constant 0 : i32
    return %c0_i32, %arg0 : i32, i32
  }
  func.func @transform_1(%arg0: i32) -> (i32, i32) {
    %c0_i32 = arith.constant 0 : i32
    %c0_i32_0 = arith.constant 0 : i32
    return %c0_i32, %arg0 : i32, i32
  }
  func.func @transform_2(%arg0: i32) -> (i32, i32) {
    %c0_i32 = arith.constant 0 : i32
    %c0_i32_0 = arith.constant 0 : i32
    return %c0_i32, %arg0 : i32, i32
  }
}

</mosaic_0001>

<llo_original>
// kernel: tpu_custom_call.1
$region0: #{tpu_custom_call.1}
  #allocation0 [shape = 'u32[]', space=smem, size = 0x4, offset = 0x4, fixed_abs, tag = 'smem constant byte address 0x4 - core index']
  #allocation1 [shape = 'u32[144,128]{1,0:T(1,128)}', space=vmem, size = 0x12000, scoped, tag = 'internal scratch']
  %s0 = inlined_call_operand.hbm [shape: f32[4,512], index: 0, kind: input, shape index: {}]
  %s1 = inlined_call_operand.hbm [shape: f32[1,512], index: 1, kind: input, shape index: {}]
  %s2 = inlined_call_operand.hbm [shape: f32[1,512], index: 2, kind: output, shape index: {}]
  %s3 = sld [smem:[#allocation0]]
  $region26: #{tpu_custom_call.1} parent=0
    _
  %s5 = ssub.s32 1, %s3
  %s6 = scalar_select 0, %s5, %s3
  $region1: #{tpu_custom_call.1} parent=0
    #allocation2 [shape = 'u8[8192]{0}', space=vmem, size = 0x2000, scoped, tag = 'input window, operand 0, single buffered']
    #allocation3 [shape = 's32[1]{0}', space=sflag, size = 0x4, scoped, tag = 'scoped memory for tpu_custom_call.1']
    #allocation4 [shape = 's32[1]{0}', space=sflag, size = 0x4, scoped, tag = 'scoped memory for tpu_custom_call.1']
    #allocation5 [shape = 'u8[2048]{0}', space=vmem, size = 0x800, scoped, tag = 'input window, operand 1, single buffered']
    #allocation6 [shape = 's32[1]{0}', space=sflag, size = 0x4, scoped, tag = 'scoped memory for tpu_custom_call.1']
    #allocation7 [shape = 'u8[2048]{0}', space=vmem, size = 0x800, scoped, tag = 'output window, operand 0, single buffered']
    %7 = vsyncpa [#allocation3], 0
    %8 = vsyncpa [#allocation6], 0
    %9 = vsyncpa [#allocation4], 0
    // Predicated region
    $region2: #{tpu_custom_call.1} parent=1 // pred_check
      _
    $region3: #{tpu_custom_call.1} parent=1 // pred_check_branch
      %11 = sbr.rel (0) target = $region5
    $region4: #{tpu_custom_call.1} parent=1 // pred_region
      %s13 = ssub.s32 256, 256
      %14 = vsyncadd [#allocation3], %s13
      %s16 = sshll.u32 [#allocation2], 4
      %s17 = int_to_ptr.vmem [resolvable:$true] %s16
      %19 = dma.hbm_to_vmem [thread:$0]  %s0, 256, %s17, [#allocation3]
    $region5: #{tpu_custom_call.1} parent=1 // pred_fallthru
      _
    // Predicated region
    $region6: #{tpu_custom_call.1} parent=1 // pred_check
      _
    $region7: #{tpu_custom_call.1} parent=1 // pred_check_branch
      %21 = sbr.rel (0) target = $region9
    $region8: #{tpu_custom_call.1} parent=1 // pred_region
      %s23 = ssub.s32 64, 64
      %24 = vsyncadd [#allocation6], %s23
      %s26 = sshll.u32 [#allocation5], 4
      %s27 = int_to_ptr.vmem [resolvable:$true] %s26
      %29 = dma.hbm_to_vmem [thread:$0]  %s1, 64, %s27, [#allocation6]
    $region9: #{tpu_custom_call.1} parent=1 // pred_fallthru
      _
    // Predicated region
    $region10: #{tpu_custom_call.1} parent=1 // pred_check
      _
    $region11: #{tpu_custom_call.1} parent=1 // pred_check_branch
      %31 = sbr.rel (0) target = $region13
    $region12: #{tpu_custom_call.1} parent=1 // pred_region
      %32 = dma.done [#allocation3], 256
    $region13: #{tpu_custom_call.1} parent=1 // pred_fallthru
      _
    // Predicated region
    $region14: #{tpu_custom_call.1} parent=1 // pred_check
      _
    $region15: #{tpu_custom_call.1} parent=1 // pred_check_branch
      %34 = sbr.rel (0) target = $region17
    $region16: #{tpu_custom_call.1} parent=1 // pred_region
      %35 = dma.done [#allocation6], 64
    $region17: #{tpu_custom_call.1} parent=1 // pred_fallthru
      _
    %v36 = vld [vmem:[#allocation2] sm:$0xff]
    %v37 = vld [vmem:[#allocation2 + $0x8] sm:$0xff]
    %v40 = vcombine.high %v36, %v36
    %v41 = vcombine.high %v37, %v37
    %vm44 = vcmask 1043456
    %v45 = vsel %vm44, %v36, 0.0
    %v46 = vrot.slane %v45, 4
    %v47 = vadd.f32 %v45, %v46
    %v48 = vrot.slane %v47, 2
    %v49 = vadd.f32 %v47, %v48
    %v50 = vrot.slane %v49, 1
    %v51 = vadd.f32 %v49, %v50
    %v52 = vsel %vm44, %v40, 0.0
    %v53 = vrot.slane %v52, 4
    %v54 = vadd.f32 %v52, %v53
    %v55 = vrot.slane %v54, 2
    %v56 = vadd.f32 %v54, %v55
    %v57 = vrot.slane %v56, 1
    %v58 = vadd.f32 %v56, %v57
    %v59 = vsel %vm44, %v37, 0.0
    %v60 = vrot.slane %v59, 4
    %v61 = vadd.f32 %v59, %v60
    %v62 = vrot.slane %v61, 2
    %v63 = vadd.f32 %v61, %v62
    %v64 = vrot.slane %v63, 1
    %v65 = vadd.f32 %v63, %v64
    %v66 = vsel %vm44, %v41, 0.0
    %v67 = vrot.slane %v66, 4
    %v68 = vadd.f32 %v66, %v67
    %v69 = vrot.slane %v68, 2
    %v70 = vadd.f32 %v68, %v69
    %v71 = vrot.slane %v70, 1
    %v72 = vadd.f32 %v70, %v71
    %v73 = vld [vmem:[#allocation5] sm:$0xf]
    %v78 = vcombine.low %v51, %v58
    %v79 = vcombine.low %v65, %v72
    %v81 = vunpack.c.l.s4 1966171168
    %v82 = vunpack.c.0.s8 %v81
    %v83 = vlaneseq
    %v84 = vshrl.u32 %v83, 7
    %v85 = vsub.s32 %v82, %v84
    %v86 = vrot.slane %v78, %v85
    %v88 = vunpack.c.l.s4 1966171168
    %v89 = vunpack.c.0.s8 %v88
    %v90 = vlaneseq
    %v91 = vshrl.u32 %v90, 7
    %v92 = vsub.s32 %v89, %v91
    %v93 = vrot.slane %v79, %v92
    %v94 = vcombine.low %v86, %v93
    %v96 = vunpack.c.l.s4 1966171168
    %v97 = vunpack.c.0.s8 %v96
    %v98 = vlaneseq
    %v99 = vshrl.u32 %v98, 7
    %v100 = vsub.s32 %v97, %v99
    %v101 = vrot.slane %v94, %v100
    %v103 = vmul.f32 %v73, %v101
    %v104 = vadd.f32 %v36, 0.0
    %v105 = vadd.f32 %v37, 0.0
    %v108 = vunpack.c.l.s4 286326784
    %v109 = vunpack.c.0.s8 %v108
    %v110 = vlaneseq
    %v111 = vshrl.u32 %v110, 7
    %v112 = vsub.s32 %v109, %v111
    %v113 = vrot.slane %v103, %v112
    %v115 = vunpack.c.l.s4 858989090
    %v116 = vunpack.c.0.s8 %v115
    %v117 = vlaneseq
    %v118 = vshrl.u32 %v117, 7
    %v119 = vsub.s32 %v116, %v118
    %v120 = vrot.slane %v103, %v119
    %vm123 = vcmp.le.f32.partialorder %v104, %v113
    %vm124 = vcmp.le.f32.partialorder %v105, %v120
    %v125 = vsel %vm123, 1, 0
    %v126 = vsel %vm124, 1, 0
    %v127 = vcvt.s32.f32 %v125
    %v128 = vcvt.s32.f32 %v126
    %v129 = vadd.f32 %v127, 0.0
    %v130 = vadd.f32 %v128, 0.0
    %v131 = vrot.slane %v36, 5
    %v132 = vrot.slane %v131, 4
    %v133 = vrot.slane %v37, 5
    %v134 = vrot.slane %v133, 4
    %v137 = vadd.f32 %v104, %v132
    %v138 = vadd.f32 %v105, %v134
    %vm139 = vcmp.le.f32.partialorder %v137, %v113
    %vm140 = vcmp.le.f32.partialorder %v138, %v120
    %v141 = vsel %vm139, 1, 0
    %v142 = vsel %vm140, 1, 0
    %v143 = vcvt.s32.f32 %v141
    %v144 = vcvt.s32.f32 %v142
    %v145 = vadd.f32 %v129, %v143
    %v146 = vadd.f32 %v130, %v144
    %v147 = vrot.slane %v36, 6
    %v148 = vrot.slane %v147, 4
    %v149 = vrot.slane %v37, 6
    %v150 = vrot.slane %v149, 4
    %v153 = vadd.f32 %v137, %v148
    %v154 = vadd.f32 %v138, %v150
    %vm155 = vcmp.le.f32.partialorder %v153, %v113
    %vm156 = vcmp.le.f32.partialorder %v154, %v120
    %v157 = vsel %vm155, 1, 0
    %v158 = vsel %vm156, 1, 0
    %v159 = vcvt.s32.f32 %v157
    %v160 = vcvt.s32.f32 %v158
    %v161 = vadd.f32 %v145, %v159
    %v162 = vadd.f32 %v146, %v160
    %v163 = vrot.slane %v36, 7
    %v164 = vrot.slane %v163, 4
    %v165 = vrot.slane %v37, 7
    %v166 = vrot.slane %v165, 4
    %v169 = vadd.f32 %v153, %v164
    %v170 = vadd.f32 %v154, %v166
    %vm171 = vcmp.le.f32.partialorder %v169, %v113
    %vm172 = vcmp.le.f32.partialorder %v170, %v120
    %v173 = vsel %vm171, 1, 0
    %v174 = vsel %vm172, 1, 0
    %v175 = vcvt.s32.f32 %v173
    %v176 = vcvt.s32.f32 %v174
    %v177 = vadd.f32 %v161, %v175
    %v178 = vadd.f32 %v162, %v176
    %v179 = vmin.f32 %v177, 3.0
    %v180 = vmin.f32 %v178, 3.0
    %v184 = vunpack.c.l.s4 1966171168
    %v185 = vunpack.c.0.s8 %v184
    %v186 = vlaneseq
    %v187 = vshrl.u32 %v186, 7
    %v188 = vsub.s32 %v185, %v187
    %v189 = vrot.slane %v179, %v188
    %v191 = vunpack.c.l.s4 1966171168
    %v192 = vunpack.c.0.s8 %v191
    %v193 = vlaneseq
    %v194 = vshrl.u32 %v193, 7
    %v195 = vsub.s32 %v192, %v194
    %v196 = vrot.slane %v180, %v195
    %v197 = vcombine.low %v189, %v196
    %v199 = vunpack.c.l.s4 1966171168
    %v200 = vunpack.c.0.s8 %v199
    %v201 = vlaneseq
    %v202 = vshrl.u32 %v201, 7
    %v203 = vsub.s32 %v200, %v202
    %v204 = vrot.slane %v197, %v203
    %v206 = vlaneseq
    %vm207 = vcmp.ge.s32.totalorder %v206, 0
    %vm208 = vcmp.lt.s32.totalorder %v206, 512
    %vm209 = vmand %vm207, %vm208
    %210 = vst.msk [vmem:[#allocation7] sm:$0xf] %vm209, %v204
    // Predicated region
    $region18: #{tpu_custom_call.1} parent=1 // pred_check
      _
    $region19: #{tpu_custom_call.1} parent=1 // pred_check_branch
      %212 = sbr.rel (0) target = $region21
    $region20: #{tpu_custom_call.1} parent=1 // pred_region
      %s214 = ssub.s32 64, 64
      %215 = vsyncadd [#allocation4], %s214
      %s217 = sshll.u32 [#allocation7], 4
      %s218 = int_to_ptr.vmem [resolvable:$true] %s217
      %220 = dma.vmem_to_hbm [thread:$0]  %s218, 64, %s2, [#allocation4]
    $region21: #{tpu_custom_call.1} parent=1 // pred_fallthru
      _
    // Predicated region
    $region22: #{tpu_custom_call.1} parent=1 // pred_check
      _
    $region23: #{tpu_custom_call.1} parent=1 // pred_check_branch
      %222 = sbr.rel (0) target = $region25
    $region24: #{tpu_custom_call.1} parent=1 // pred_region
      %223 = dma.done [#allocation4], 64
    $region25: #{tpu_custom_call.1} parent=1 // pred_fallthru
      _
    %224 = vsyncpa [#allocation3], 1
    %225 = vsyncpa [#allocation6], 1
    %226 = vsyncpa [#allocation4], 1

</llo_original>
